<compile_context>
chip_gen: v5e
topology: v5e:2x2
jax: 0.10.0
libtpu: 0.0.40
codegen_flags: <defaults>
</compile_context>

<pallas_src>
import functools

import jax
import jax.numpy as jnp
from jax.experimental import pallas as pl
from jax.experimental.pallas import tpu as pltpu

_LANE = 128


def _round_up(v, m):
    return ((v + m - 1) // m) * m


def _act(v, kind, neg_slope):
    if kind == 'relu':
        return jnp.maximum(v, 0.0)
    if kind == 'leakyrelu':
        return jnp.where(v >= 0.0, v, neg_slope * v)
    if kind == 'tanh':
        return jnp.tanh(v)
    return v  # identity


def _vmem_capacity_bytes():
    """Per-core VMEM capacity; conservative fallback if the query fails."""
    try:
        info = pltpu.get_tpu_info()
        cap = int(getattr(info, "vmem_capacity_bytes", 0) or 0)
        if cap > 0:
            return cap
    except Exception:
        pass
    return 64 * 1024 * 1024  # v7x per-TensorCore VMEM (smallest of the three gens)


def _cost_estimate(flops, bytes_accessed, transcendentals):
    try:
        return pl.CostEstimate(flops=int(flops),
                               transcendentals=int(transcendentals),
                               bytes_accessed=int(bytes_accessed))
    except Exception:
        return None


# ----------------------------- kernels ------------------------------------- #

def _mlp_resident_kernel(n_linear, hidden_actv, output_actv, neg_slope, *refs):
    """All weights resident in VMEM; one batch tile per grid step.

    refs = (x_ref, w0, b0, w1, b1, ..., w_{n-1}, b_{n-1}, out_ref)
    PyTorch semantics: h = x@W0+b0; for each hidden Linear h = act(h)@Wi+bi;
    out = output_act(act(h)@W_last + b_last).
    """
    x_ref = refs[0]
    out_ref = refs[-1]
    wb = refs[1:-1]

    h = x_ref[...]
    for li in range(n_linear):
        w = wb[2 * li][...]
        b = wb[2 * li + 1][...].astype(jnp.float32)          # (1, fan_out_p)
        if li > 0:
            h = _act(h, hidden_actv, neg_slope)
        # Feed the MXU in the parameter dtype (bf16 stays bf16); f32 accumulate.
        h = jnp.dot(h.astype(w.dtype), w, preferred_element_type=jnp.float32) + b
    out_ref[...] = _act(h, output_actv, neg_slope).astype(out_ref.dtype)


def _mlp_stream_kernel(n_linear, in_dim_p, out_dim_p, hidden_actv, output_actv,
                       neg_slope, x_ref, w_ref, b_ref, out_ref, h_ref):
    """Layer-streaming path: grid = (batch_tiles, n_linear), weights streamed
    along the layer axis, activation kept in a VMEM f32 scratch."""
    l = pl.program_id(1)

    @pl.when(l == 0)
    def _():
        h_ref[...] = jnp.zeros_like(h_ref)
        h_ref[:, :in_dim_p] = x_ref[...].astype(jnp.float32)

    @pl.when(l > 0)
    def _():
        h_ref[...] = _act(h_ref[...], hidden_actv, neg_slope)

    h = h_ref[...]
    w = w_ref[...]
    hn = jnp.dot(h.astype(w.dtype), w, preferred_element_type=jnp.float32)
    hn = hn + b_ref[...].astype(jnp.float32)
    h_ref[...] = hn

    @pl.when(l == n_linear - 1)
    def _():
        out_ref[...] = _act(hn[:, :out_dim_p], output_actv, neg_slope).astype(out_ref.dtype)


# ----------------------------- wrapper -------------------------------------- #

def mlp_forward(x, params, *, hidden_actv='relu', output_actv='relu',
                negative_slope=0.01, compute_dtype=None, batch_tile=512,
                force_stream=False):
    """params: list of (W, b) with W shaped (fan_in, fan_out), b shaped (fan_out,).

    compute_dtype: optional dtype the weights/biases (and MXU operands) are cast
    to, e.g. jnp.bfloat16 for full-rate MXU; accumulation is always f32.
    """
    orig_shape = x.shape
    in_dim = params[0][0].shape[0]
    assert orig_shape[-1] == in_dim, f"got {orig_shape}, expected last dim {in_dim}"
    x2 = x.reshape(-1, in_dim)

    batch = x2.shape[0]
    n_linear = len(params)
    out_dim = params[-1][0].shape[1]
    out_dtype = x2.dtype
    x_isz = jnp.dtype(x2.dtype).itemsize
    o_isz = jnp.dtype(out_dtype).itemsize

    w_dt = jnp.dtype(compute_dtype) if compute_dtype is not None else jnp.dtype(params[0][0].dtype)
    b_dt = jnp.dtype(compute_dtype) if compute_dtype is not None else jnp.dtype(params[0][1].dtype)

    # ---- lane-dense padded feature sizes ----
    in_dim_p = _round_up(in_dim, _LANE)
    fo_ps = [_round_up(w.shape[1], _LANE) for w, _ in params]
    out_dim_p = fo_ps[-1]
    max_feat_p = max([in_dim_p] + fo_ps)

    # ---- batch tile: dtype-aware sublane multiple, minimal fringe,
    #      >=2 tiles for large batches so v7x megacore can split the grid ----
    sublane = max(8, 32 // x_isz)                  # 8 f32, 16 bf16, 32 int8/fp8
    n_tiles = max(1, -(-batch // batch_tile))
    if batch >= 512 and n_tiles < 2:
        n_tiles = 2                                # v7x: 2 TensorCores per chip
    tm = _round_up(-(-batch // n_tiles), sublane)

    # ---- resident-weight footprint (padded, compute dtype) ----
    param_bytes = 0
    fi_p = in_dim_p
    for fo_p in fo_ps:
        param_bytes += fi_p * fo_p * w_dt.itemsize + fo_p * b_dt.itemsize
        fi_p = fo_p

    cap = _vmem_capacity_bytes()
    budget = int(0.80 * cap)                       # ~51 MiB v7x, ~102 MiB v5e/v6e

    def resident_fp(tile_m):
        x_tile = tile_m * in_dim_p * x_isz
        o_tile = tile_m * out_dim_p * o_isz
        interm = 3 * tile_m * max_feat_p * 4       # live f32 intermediates
        return 2 * param_bytes + 2 * (x_tile + o_tile) + interm + (1 << 20)

    use_stream = bool(force_stream)
    if not use_stream:
        tm_r = tm
        while resident_fp(tm_r) > budget and tm_r > sublane:
            tm_r = max(sublane, _round_up(tm_r // 2, sublane))
        if resident_fp(tm_r) > budget:
            use_stream = True
        else:
            tm = tm_r

    has_tanh = 'tanh' in (hidden_actv, output_actv)

    if not use_stream:
        # ------------------------- resident path ---------------------------- #
        batch_p = _round_up(batch, tm)
        n_tiles = batch_p // tm
        x_p = jnp.zeros((batch_p, in_dim_p), x2.dtype).at[:batch, :in_dim].set(x2)

        def const_spec(shape):
            # Single-buffer the constant-index (resident) parameter blocks.
            if hasattr(pl, "Buffered"):
                try:
                    return pl.BlockSpec(shape, lambda i: (0,) * len(shape),
                                        pipeline_mode=pl.Buffered(1))
                except TypeError:
                    pass
            return pl.BlockSpec(shape, lambda i: (0,) * len(shape))

        wb_args = []
        in_specs = [pl.BlockSpec((tm, in_dim_p), lambda i: (i, 0))]
        fallback_specs = [pl.BlockSpec((tm, in_dim_p), lambda i: (i, 0))]
        fi_p = in_dim_p
        for (w, b), fo_p in zip(params, fo_ps):
            w_p = jnp.zeros((fi_p, fo_p), w_dt).at[:w.shape[0], :w.shape[1]].set(w.astype(w_dt))
            b_p = jnp.zeros((1, fo_p), b_dt).at[0, :b.shape[0]].set(b.astype(b_dt))
            wb_args += [w_p, b_p]
            in_specs += [const_spec((fi_p, fo_p)), const_spec((1, fo_p))]
            fallback_specs += [pl.BlockSpec((fi_p, fo_p), lambda i: (0, 0)),
                               pl.BlockSpec((1, fo_p), lambda i: (0, 0))]
            fi_p = fo_p

        flops = 2 * batch_p * sum(a * b for a, b in zip([in_dim_p] + fo_ps[:-1], fo_ps))
        trans = batch_p * sum(fo_ps) if has_tanh else 0
        bytes_acc = x_p.size * x_isz + batch_p * out_dim_p * o_isz + param_bytes
        vmem_limit = int(min(max(int(1.25 * resident_fp(tm)), 32 * 1024 * 1024), budget))

        kernel = functools.partial(_mlp_resident_kernel, n_linear, hidden_actv,
                                   output_actv, negative_slope)

        def run(specs):
            return pl.pallas_call(
                kernel,
                out_shape=jax.ShapeDtypeStruct((batch_p, out_dim_p), out_dtype),
                grid=(n_tiles,),
                in_specs=specs,
                out_specs=pl.BlockSpec((tm, out_dim_p), lambda i: (i, 0)),
                compiler_params=pltpu.CompilerParams(
                    dimension_semantics=("parallel",),      # megacore split on v7x
                    vmem_limit_bytes=vmem_limit),
                cost_estimate=_cost_estimate(flops, bytes_acc, trans),
            )(x_p, *wb_args)

        try:
            out_p = run(in_specs)
        except Exception:
            # If pl.Buffered(1) is rejected by this backend, retry with the
            # default (double-buffered) specs.
            out_p = run(fallback_specs)

    else:
        # ------------------------- streaming path --------------------------- #
        F = max_feat_p
        w_all = jnp.zeros((n_linear, F, F), w_dt)
        b_all = jnp.zeros((n_linear, 1, F), b_dt)
        for li, (w, b) in enumerate(params):
            w_all = w_all.at[li, :w.shape[0], :w.shape[1]].set(w.astype(w_dt))
            b_all = b_all.at[li, 0, :b.shape[0]].set(b.astype(b_dt))

        def stream_fp(tile_m):
            return (2 * (F * F * w_dt.itemsize + F * b_dt.itemsize)
                    + 2 * tile_m * in_dim_p * x_isz
                    + 2 * tile_m * out_dim_p * o_isz
                    + tile_m * F * 4 + (1 << 20))

        while stream_fp(tm) > budget and tm > sublane:
            tm = max(sublane, _round_up(tm // 2, sublane))
        # TODO(synk): K-dim tile the (F, F) layer matmul (VMEM accumulator) if a
        #             single streamed weight block still exceeds the VMEM budget.

        batch_p = _round_up(batch, tm)
        n_tiles = batch_p // tm
        x_p = jnp.zeros((batch_p, in_dim_p), x2.dtype).at[:batch, :in_dim].set(x2)

        flops = 2 * batch_p * n_linear * F * F
        trans = batch_p * F * n_linear if has_tanh else 0
        bytes_acc = (x_p.size * x_isz + batch_p * out_dim_p * o_isz
                     + n_tiles * (w_all.size * w_dt.itemsize + b_all.size * b_dt.itemsize))
        vmem_limit = int(min(max(int(1.25 * stream_fp(tm)), 32 * 1024 * 1024), budget))

        kernel = functools.partial(_mlp_stream_kernel, n_linear, in_dim_p, out_dim_p,
                                   hidden_actv, output_actv, negative_slope)

        out_p = pl.pallas_call(
            kernel,
            out_shape=jax.ShapeDtypeStruct((batch_p, out_dim_p), out_dtype),
            grid=(n_tiles, n_linear),
            in_specs=[pl.BlockSpec((tm, in_dim_p), lambda i, l: (i, 0)),
                      pl.BlockSpec((None, F, F), lambda i, l: (l, 0, 0)),
                      pl.BlockSpec((None, 1, F), lambda i, l: (l, 0, 0))],
            out_specs=pl.BlockSpec((tm, out_dim_p), lambda i, l: (i, 0)),
            scratch_shapes=[pltpu.VMEM((tm, F), jnp.float32)],
            compiler_params=pltpu.CompilerParams(
                dimension_semantics=("parallel", "arbitrary"),
                vmem_limit_bytes=vmem_limit),
            cost_estimate=_cost_estimate(flops, bytes_acc, trans),
        )(x_p, w_all, b_all)

    out = out_p[:batch, :out_dim]
    return out.reshape(orig_shape[:-1] + (out_dim,))


# ------------------------- init & pure-JAX reference ------------------------ #

def init_mlp_params(key, in_dim, hidden_dim, hidden_layers, out_dim, dtype=jnp.float32):
    """Layers: Linear(in,hidden), hidden_layers x Linear(hidden,hidden),
    Linear(hidden,out).  PyTorch-style U(-1/sqrt(fan_in), 1/sqrt(fan_in));
    weights stored pre-transposed as (fan_in, fan_out)."""
    dims = [(in_dim, hidden_dim)] + [(hidden_dim, hidden_dim)] * hidden_layers + [(hidden_dim, out_dim)]
    params = []
    for fi, fo in dims:
        key, kw, kb = jax.random.split(key, 3)
        bound = 1.0 / (fi ** 0.5)
        w = jax.random.uniform(kw, (fi, fo), dtype, minval=-bound, maxval=bound)
        b = jax.random.uniform(kb, (fo,), dtype, minval=-bound, maxval=bound)
        params.append((w, b))
    return params


def mlp_reference(x, params, hidden_actv='relu', output_actv='relu',
                  negative_slope=0.01, compute_dtype=None):
    def mm(h, w, b):
        if compute_dtype is not None:
            h = h.astype(compute_dtype)
            w = w.astype(compute_dtype)
            b = b.astype(compute_dtype)
        return jnp.dot(h, w, preferred_element_type=jnp.float32) + b.astype(jnp.float32)

    h = mm(x, *params[0])
    for w, b in params[1:]:
        h = mm(_act(h, hidden_actv, negative_slope), w, b)
    return _act(h, output_actv, negative_slope)


if __name__ == "__main__":
    # Small shapes consistent with the module: batch=8, in_dim=4, hidden=32,
    # 2 hidden layers, out_dim=32 (hidden_actv=relu, output_actv=relu).
    batch, in_dim, hidden_dim, hidden_layers, out_dim = 8, 4, 32, 2, 32

    key = jax.random.PRNGKey(0)
    kx, kp = jax.random.split(key)
    x = jax.random.normal(kx, (batch, in_dim), jnp.float32)
    params = init_mlp_params(kp, in_dim, hidden_dim, hidden_layers, out_dim)
    ref = mlp_reference(x, params)

    # 1) f32 resident-weight path (module-default numerics).
    out = jax.block_until_ready(mlp_forward(x, params))
    assert out.shape == (batch, out_dim), out.shape
    assert jnp.allclose(out, ref, atol=1e-5, rtol=1e-5), "f32 resident mismatch"

    # 2) bf16 compute path (full-rate MXU, halved resident weight VMEM).
    out_bf = jax.block_until_ready(mlp_forward(x, params, compute_dtype=jnp.bfloat16))
    ref_bf = mlp_reference(x, params, compute_dtype=jnp.bfloat16)
    assert jnp.allclose(out_bf, ref_bf, atol=5e-2, rtol=5e-2), "bf16 resident mismatch"

    # 3) layer-streaming path (used automatically when padded weights don't fit
    #    the per-core VMEM budget; forced here to exercise it).
    out_s = jax.block_until_ready(mlp_forward(x, params, force_stream=True))
    assert jnp.allclose(out_s, ref, atol=1e-5, rtol=1e-5), "streaming mismatch"

    print("KERNEL_OK")
</pallas_src>

<mosaic_0001>
module attributes {stable_mosaic.version = 11 : i64} {
  func.func @_mlp_resident_kernel(%arg0: i32, %arg1: memref<8x128xf32, #tpu.memory_space<vmem>>, %arg2: memref<128x128xf32, #tpu.memory_space<vmem>>, %arg3: memref<1x128xf32, #tpu.memory_space<vmem>>, %arg4: memref<128x128xf32, #tpu.memory_space<vmem>>, %arg5: memref<1x128xf32, #tpu.memory_space<vmem>>, %arg6: memref<128x128xf32, #tpu.memory_space<vmem>>, %arg7: memref<1x128xf32, #tpu.memory_space<vmem>>, %arg8: memref<128x128xf32, #tpu.memory_space<vmem>>, %arg9: memref<1x128xf32, #tpu.memory_space<vmem>>, %arg10: memref<8x128xf32, #tpu.memory_space<vmem>>) attributes {dimension_semantics = [#tpu.dimension_semantics<parallel>], iteration_bounds = array<i64: 1>, scalar_prefetch = 0 : i64, scratch_operands = 0 : i64, tpu.core_type = #tpu.core_type<tc>, window_params = [{transform_indices = @transform_0, window_bounds = array<i64: 8, 128>}, {pipeline_mode = #tpu.pipeline_mode<synchronous>, transform_indices = @transform_1, window_bounds = array<i64: 128, 128>}, {pipeline_mode = #tpu.pipeline_mode<synchronous>, transform_indices = @transform_2, window_bounds = array<i64: 1, 128>}, {pipeline_mode = #tpu.pipeline_mode<synchronous>, transform_indices = @transform_3, window_bounds = array<i64: 128, 128>}, {pipeline_mode = #tpu.pipeline_mode<synchronous>, transform_indices = @transform_4, window_bounds = array<i64: 1, 128>}, {pipeline_mode = #tpu.pipeline_mode<synchronous>, transform_indices = @transform_5, window_bounds = array<i64: 128, 128>}, {pipeline_mode = #tpu.pipeline_mode<synchronous>, transform_indices = @transform_6, window_bounds = array<i64: 1, 128>}, {pipeline_mode = #tpu.pipeline_mode<synchronous>, transform_indices = @transform_7, window_bounds = array<i64: 128, 128>}, {pipeline_mode = #tpu.pipeline_mode<synchronous>, transform_indices = @transform_8, window_bounds = array<i64: 1, 128>}, {transform_indices = @transform_9, window_bounds = array<i64: 8, 128>}]} {
    %c0 = arith.constant 0 : index
    %c0_0 = arith.constant 0 : index
    %0 = vector.load %arg1[%c0, %c0_0] : memref<8x128xf32, #tpu.memory_space<vmem>>, vector<8x128xf32>
    %c0_1 = arith.constant 0 : index
    %c0_2 = arith.constant 0 : index
    %1 = vector.load %arg2[%c0_1, %c0_2] : memref<128x128xf32, #tpu.memory_space<vmem>>, vector<128x128xf32>
    %c0_3 = arith.constant 0 : index
    %c0_4 = arith.constant 0 : index
    %2 = vector.load %arg3[%c0_3, %c0_4] : memref<1x128xf32, #tpu.memory_space<vmem>>, vector<1x128xf32>
    %cst = arith.constant dense<0.000000e+00> : vector<8x128xf32>
    %3 = tpu.matmul %0, %1, %cst {dimension_numbers = #tpu.dot_dimension_numbers<[1], [0], [0], [1], [0, 0, 1, 1], [], []>} : vector<8x128xf32>, vector<128x128xf32>, vector<8x128xf32> -> vector<8x128xf32>
    %4 = vector.broadcast %2 : vector<1x128xf32> to vector<8x128xf32>
    %5 = arith.addf %3, %4 : vector<8x128xf32>
    %c0_5 = arith.constant 0 : index
    %c0_6 = arith.constant 0 : index
    %6 = vector.load %arg4[%c0_5, %c0_6] : memref<128x128xf32, #tpu.memory_space<vmem>>, vector<128x128xf32>
    %c0_7 = arith.constant 0 : index
    %c0_8 = arith.constant 0 : index
    %7 = vector.load %arg5[%c0_7, %c0_8] : memref<1x128xf32, #tpu.memory_space<vmem>>, vector<1x128xf32>
    %cst_9 = arith.constant 0.000000e+00 : f32
    %8 = vector.broadcast %cst_9 : f32 to vector<8x128xf32>
    %9 = arith.maximumf %5, %8 : vector<8x128xf32>
    %cst_10 = arith.constant dense<0.000000e+00> : vector<8x128xf32>
    %10 = tpu.matmul %9, %6, %cst_10 {dimension_numbers = #tpu.dot_dimension_numbers<[1], [0], [0], [1], [0, 0, 1, 1], [], []>} : vector<8x128xf32>, vector<128x128xf32>, vector<8x128xf32> -> vector<8x128xf32>
    %11 = vector.broadcast %7 : vector<1x128xf32> to vector<8x128xf32>
    %12 = arith.addf %10, %11 : vector<8x128xf32>
    %c0_11 = arith.constant 0 : index
    %c0_12 = arith.constant 0 : index
    %13 = vector.load %arg6[%c0_11, %c0_12] : memref<128x128xf32, #tpu.memory_space<vmem>>, vector<128x128xf32>
    %c0_13 = arith.constant 0 : index
    %c0_14 = arith.constant 0 : index
    %14 = vector.load %arg7[%c0_13, %c0_14] : memref<1x128xf32, #tpu.memory_space<vmem>>, vector<1x128xf32>
    %cst_15 = arith.constant 0.000000e+00 : f32
    %15 = vector.broadcast %cst_15 : f32 to vector<8x128xf32>
    %16 = arith.maximumf %12, %15 : vector<8x128xf32>
    %cst_16 = arith.constant dense<0.000000e+00> : vector<8x128xf32>
    %17 = tpu.matmul %16, %13, %cst_16 {dimension_numbers = #tpu.dot_dimension_numbers<[1], [0], [0], [1], [0, 0, 1, 1], [], []>} : vector<8x128xf32>, vector<128x128xf32>, vector<8x128xf32> -> vector<8x128xf32>
    %18 = vector.broadcast %14 : vector<1x128xf32> to vector<8x128xf32>
    %19 = arith.addf %17, %18 : vector<8x128xf32>
    %c0_17 = arith.constant 0 : index
    %c0_18 = arith.constant 0 : index
    %20 = vector.load %arg8[%c0_17, %c0_18] : memref<128x128xf32, #tpu.memory_space<vmem>>, vector<128x128xf32>
    %c0_19 = arith.constant 0 : index
    %c0_20 = arith.constant 0 : index
    %21 = vector.load %arg9[%c0_19, %c0_20] : memref<1x128xf32, #tpu.memory_space<vmem>>, vector<1x128xf32>
    %cst_21 = arith.constant 0.000000e+00 : f32
    %22 = vector.broadcast %cst_21 : f32 to vector<8x128xf32>
    %23 = arith.maximumf %19, %22 : vector<8x128xf32>
    %cst_22 = arith.constant dense<0.000000e+00> : vector<8x128xf32>
    %24 = tpu.matmul %23, %20, %cst_22 {dimension_numbers = #tpu.dot_dimension_numbers<[1], [0], [0], [1], [0, 0, 1, 1], [], []>} : vector<8x128xf32>, vector<128x128xf32>, vector<8x128xf32> -> vector<8x128xf32>
    %25 = vector.broadcast %21 : vector<1x128xf32> to vector<8x128xf32>
    %26 = arith.addf %24, %25 : vector<8x128xf32>
    %cst_23 = arith.constant 0.000000e+00 : f32
    %27 = vector.broadcast %cst_23 : f32 to vector<8x128xf32>
    %28 = arith.maximumf %26, %27 : vector<8x128xf32>
    %c0_24 = arith.constant 0 : index
    %c0_25 = arith.constant 0 : index
    %29 = vector.load %arg10[%c0_24, %c0_25] : memref<8x128xf32, #tpu.memory_space<vmem>>, vector<8x128xf32>
    tpu.vector_store %arg10[%c0_24, %c0_25], %28 {strides = array<i32>} : memref<8x128xf32, #tpu.memory_space<vmem>>, vector<8x128xf32>,
    return
  }
  func.func @transform_0(%arg0: i32) -> (i32, i32) {
    %c0_i32 = arith.constant 0 : i32
    %c0_i32_0 = arith.constant 0 : i32
    return %arg0, %c0_i32 : i32, i32
  }
  func.func @transform_1(%arg0: i32) -> (i32, i32) {
    %c0_i32 = arith.constant 0 : i32
    %c0_i32_0 = arith.constant 0 : i32
    %c0_i32_1 = arith.constant 0 : i32
    return %c0_i32, %c0_i32_0 : i32, i32
  }
  func.func @transform_2(%arg0: i32) -> (i32, i32) {
    %c0_i32 = arith.constant 0 : i32
    %c0_i32_0 = arith.constant 0 : i32
    %c0_i32_1 = arith.constant 0 : i32
    return %c0_i32, %c0_i32_0 : i32, i32
  }
  func.func @transform_3(%arg0: i32) -> (i32, i32) {
    %c0_i32 = arith.constant 0 : i32
    %c0_i32_0 = arith.constant 0 : i32
    %c0_i32_1 = arith.constant 0 : i32
    return %c0_i32, %c0_i32_0 : i32, i32
  }
  func.func @transform_4(%arg0: i32) -> (i32, i32) {
    %c0_i32 = arith.constant 0 : i32
    %c0_i32_0 = arith.constant 0 : i32
    %c0_i32_1 = arith.constant 0 : i32
    return %c0_i32, %c0_i32_0 : i32, i32
  }
  func.func @transform_5(%arg0: i32) -> (i32, i32) {
    %c0_i32 = arith.constant 0 : i32
    %c0_i32_0 = arith.constant 0 : i32
    %c0_i32_1 = arith.constant 0 : i32
    return %c0_i32, %c0_i32_0 : i32, i32
  }
  func.func @transform_6(%arg0: i32) -> (i32, i32) {
    %c0_i32 = arith.constant 0 : i32
    %c0_i32_0 = arith.constant 0 : i32
    %c0_i32_1 = arith.constant 0 : i32
    return %c0_i32, %c0_i32_0 : i32, i32
  }
  func.func @transform_7(%arg0: i32) -> (i32, i32) {
    %c0_i32 = arith.constant 0 : i32
    %c0_i32_0 = arith.constant 0 : i32
    %c0_i32_1 = arith.constant 0 : i32
    return %c0_i32, %c0_i32_0 : i32, i32
  }
  func.func @transform_8(%arg0: i32) -> (i32, i32) {
    %c0_i32 = arith.constant 0 : i32
    %c0_i32_0 = arith.constant 0 : i32
    %c0_i32_1 = arith.constant 0 : i32
    return %c0_i32, %c0_i32_0 : i32, i32
  }
  func.func @transform_9(%arg0: i32) -> (i32, i32) {
    %c0_i32 = arith.constant 0 : i32
    %c0_i32_0 = arith.constant 0 : i32
    return %arg0, %c0_i32 : i32, i32
  }
}

module attributes {stable_mosaic.version = 11 : i64} {
  func.func @_mlp_resident_kernel(%arg0: i32, %arg1: memref<8x128xf32, #tpu.memory_space<vmem>>, %arg2: memref<128x128xf32, #tpu.memory_space<vmem>>, %arg3: memref<1x128xf32, #tpu.memory_space<vmem>>, %arg4: memref<128x128xf32, #tpu.memory_space<vmem>>, %arg5: memref<1x128xf32, #tpu.memory_space<vmem>>, %arg6: memref<128x128xf32, #tpu.memory_space<vmem>>, %arg7: memref<1x128xf32, #tpu.memory_space<vmem>>, %arg8: memref<128x128xf32, #tpu.memory_space<vmem>>, %arg9: memref<1x128xf32, #tpu.memory_space<vmem>>, %arg10: memref<8x128xf32, #tpu.memory_space<vmem>>) attributes {dimension_semantics = [#tpu.dimension_semantics<parallel>], iteration_bounds = array<i64: 1>, scalar_prefetch = 0 : i64, scratch_operands = 0 : i64, tpu.core_type = #tpu.core_type<tc>, window_params = [{transform_indices = @transform_0, window_bounds = array<i64: 8, 128>}, {pipeline_mode = #tpu.pipeline_mode<synchronous>, transform_indices = @transform_1, window_bounds = array<i64: 128, 128>}, {pipeline_mode = #tpu.pipeline_mode<synchronous>, transform_indices = @transform_2, window_bounds = array<i64: 1, 128>}, {pipeline_mode = #tpu.pipeline_mode<synchronous>, transform_indices = @transform_3, window_bounds = array<i64: 128, 128>}, {pipeline_mode = #tpu.pipeline_mode<synchronous>, transform_indices = @transform_4, window_bounds = array<i64: 1, 128>}, {pipeline_mode = #tpu.pipeline_mode<synchronous>, transform_indices = @transform_5, window_bounds = array<i64: 128, 128>}, {pipeline_mode = #tpu.pipeline_mode<synchronous>, transform_indices = @transform_6, window_bounds = array<i64: 1, 128>}, {pipeline_mode = #tpu.pipeline_mode<synchronous>, transform_indices = @transform_7, window_bounds = array<i64: 128, 128>}, {pipeline_mode = #tpu.pipeline_mode<synchronous>, transform_indices = @transform_8, window_bounds = array<i64: 1, 128>}, {transform_indices = @transform_9, window_bounds = array<i64: 8, 128>}]} {
    %c0 = arith.constant 0 : index
    %c0_0 = arith.constant 0 : index
    %0 = vector.load %arg1[%c0, %c0_0] : memref<8x128xf32, #tpu.memory_space<vmem>>, vector<8x128xf32>
    %c0_1 = arith.constant 0 : index
    %c0_2 = arith.constant 0 : index
    %1 = vector.load %arg2[%c0_1, %c0_2] : memref<128x128xf32, #tpu.memory_space<vmem>>, vector<128x128xf32>
    %c0_3 = arith.constant 0 : index
    %c0_4 = arith.constant 0 : index
    %2 = vector.load %arg3[%c0_3, %c0_4] : memref<1x128xf32, #tpu.memory_space<vmem>>, vector<1x128xf32>
    %cst = arith.constant dense<0.000000e+00> : vector<8x128xf32>
    %3 = tpu.matmul %0, %1, %cst {dimension_numbers = #tpu.dot_dimension_numbers<[1], [0], [0], [1], [0, 0, 1, 1], [], []>} : vector<8x128xf32>, vector<128x128xf32>, vector<8x128xf32> -> vector<8x128xf32>
    %4 = vector.broadcast %2 : vector<1x128xf32> to vector<8x128xf32>
    %5 = arith.addf %3, %4 : vector<8x128xf32>
    %c0_5 = arith.constant 0 : index
    %c0_6 = arith.constant 0 : index
    %6 = vector.load %arg4[%c0_5, %c0_6] : memref<128x128xf32, #tpu.memory_space<vmem>>, vector<128x128xf32>
    %c0_7 = arith.constant 0 : index
    %c0_8 = arith.constant 0 : index
    %7 = vector.load %arg5[%c0_7, %c0_8] : memref<1x128xf32, #tpu.memory_space<vmem>>, vector<1x128xf32>
    %cst_9 = arith.constant 0.000000e+00 : f32
    %8 = vector.broadcast %cst_9 : f32 to vector<8x128xf32>
    %9 = arith.maximumf %5, %8 : vector<8x128xf32>
    %cst_10 = arith.constant dense<0.000000e+00> : vector<8x128xf32>
    %10 = tpu.matmul %9, %6, %cst_10 {dimension_numbers = #tpu.dot_dimension_numbers<[1], [0], [0], [1], [0, 0, 1, 1], [], []>} : vector<8x128xf32>, vector<128x128xf32>, vector<8x128xf32> -> vector<8x128xf32>
    %11 = vector.broadcast %7 : vector<1x128xf32> to vector<8x128xf32>
    %12 = arith.addf %10, %11 : vector<8x128xf32>
    %c0_11 = arith.constant 0 : index
    %c0_12 = arith.constant 0 : index
    %13 = vector.load %arg6[%c0_11, %c0_12] : memref<128x128xf32, #tpu.memory_space<vmem>>, vector<128x128xf32>
    %c0_13 = arith.constant 0 : index
    %c0_14 = arith.constant 0 : index
    %14 = vector.load %arg7[%c0_13, %c0_14] : memref<1x128xf32, #tpu.memory_space<vmem>>, vector<1x128xf32>
    %cst_15 = arith.constant 0.000000e+00 : f32
    %15 = vector.broadcast %cst_15 : f32 to vector<8x128xf32>
    %16 = arith.maximumf %12, %15 : vector<8x128xf32>
    %cst_16 = arith.constant dense<0.000000e+00> : vector<8x128xf32>
    %17 = tpu.matmul %16, %13, %cst_16 {dimension_numbers = #tpu.dot_dimension_numbers<[1], [0], [0], [1], [0, 0, 1, 1], [], []>} : vector<8x128xf32>, vector<128x128xf32>, vector<8x128xf32> -> vector<8x128xf32>
    %18 = vector.broadcast %14 : vector<1x128xf32> to vector<8x128xf32>
    %19 = arith.addf %17, %18 : vector<8x128xf32>
    %c0_17 = arith.constant 0 : index
    %c0_18 = arith.constant 0 : index
    %20 = vector.load %arg8[%c0_17, %c0_18] : memref<128x128xf32, #tpu.memory_space<vmem>>, vector<128x128xf32>
    %c0_19 = arith.constant 0 : index
    %c0_20 = arith.constant 0 : index
    %21 = vector.load %arg9[%c0_19, %c0_20] : memref<1x128xf32, #tpu.memory_space<vmem>>, vector<1x128xf32>
    %cst_21 = arith.constant 0.000000e+00 : f32
    %22 = vector.broadcast %cst_21 : f32 to vector<8x128xf32>
    %23 = arith.maximumf %19, %22 : vector<8x128xf32>
    %cst_22 = arith.constant dense<0.000000e+00> : vector<8x128xf32>
    %24 = tpu.matmul %23, %20, %cst_22 {dimension_numbers = #tpu.dot_dimension_numbers<[1], [0], [0], [1], [0, 0, 1, 1], [], []>} : vector<8x128xf32>, vector<128x128xf32>, vector<8x128xf32> -> vector<8x128xf32>
    %25 = vector.broadcast %21 : vector<1x128xf32> to vector<8x128xf32>
    %26 = arith.addf %24, %25 : vector<8x128xf32>
    %cst_23 = arith.constant 0.000000e+00 : f32
    %27 = vector.broadcast %cst_23 : f32 to vector<8x128xf32>
    %28 = arith.maximumf %26, %27 : vector<8x128xf32>
    %c0_24 = arith.constant 0 : index
    %c0_25 = arith.constant 0 : index
    %29 = vector.load %arg10[%c0_24, %c0_25] : memref<8x128xf32, #tpu.memory_space<vmem>>, vector<8x128xf32>
    tpu.vector_store %arg10[%c0_24, %c0_25], %28 {strides = array<i32>} : memref<8x128xf32, #tpu.memory_space<vmem>>, vector<8x128xf32>,
    return
  }
  func.func @transform_0(%arg0: i32) -> (i32, i32) {
    %c0_i32 = arith.constant 0 : i32
    %c0_i32_0 = arith.constant 0 : i32
    return %arg0, %c0_i32 : i32, i32
  }
  func.func @transform_1(%arg0: i32) -> (i32, i32) {
    %c0_i32 = arith.constant 0 : i32
    %c0_i32_0 = arith.constant 0 : i32
    %c0_i32_1 = arith.constant 0 : i32
    return %c0_i32, %c0_i32_0 : i32, i32
  }
  func.func @transform_2(%arg0: i32) -> (i32, i32) {
    %c0_i32 = arith.constant 0 : i32
    %c0_i32_0 = arith.constant 0 : i32
    %c0_i32_1 = arith.constant 0 : i32
    return %c0_i32, %c0_i32_0 : i32, i32
  }
  func.func @transform_3(%arg0: i32) -> (i32, i32) {
    %c0_i32 = arith.constant 0 : i32
    %c0_i32_0 = arith.constant 0 : i32
    %c0_i32_1 = arith.constant 0 : i32
    return %c0_i32, %c0_i32_0 : i32, i32
  }
  func.func @transform_4(%arg0: i32) -> (i32, i32) {
    %c0_i32 = arith.constant 0 : i32
    %c0_i32_0 = arith.constant 0 : i32
    %c0_i32_1 = arith.constant 0 : i32
    return %c0_i32, %c0_i32_0 : i32, i32
  }
  func.func @transform_5(%arg0: i32) -> (i32, i32) {
    %c0_i32 = arith.constant 0 : i32
    %c0_i32_0 = arith.constant 0 : i32
    %c0_i32_1 = arith.constant 0 : i32
    return %c0_i32, %c0_i32_0 : i32, i32
  }
  func.func @transform_6(%arg0: i32) -> (i32, i32) {
    %c0_i32 = arith.constant 0 : i32
    %c0_i32_0 = arith.constant 0 : i32
    %c0_i32_1 = arith.constant 0 : i32
    return %c0_i32, %c0_i32_0 : i32, i32
  }
  func.func @transform_7(%arg0: i32) -> (i32, i32) {
    %c0_i32 = arith.constant 0 : i32
    %c0_i32_0 = arith.constant 0 : i32
    %c0_i32_1 = arith.constant 0 : i32
    return %c0_i32, %c0_i32_0 : i32, i32
  }
  func.func @transform_8(%arg0: i32) -> (i32, i32) {
    %c0_i32 = arith.constant 0 : i32
    %c0_i32_0 = arith.constant 0 : i32
    %c0_i32_1 = arith.constant 0 : i32
    return %c0_i32, %c0_i32_0 : i32, i32
  }
  func.func @transform_9(%arg0: i32) -> (i32, i32) {
    %c0_i32 = arith.constant 0 : i32
    %c0_i32_0 = arith.constant 0 : i32
    return %arg0, %c0_i32 : i32, i32
  }
}

</mosaic_0001>

<llo_original>
// kernel: tpu_custom_call.1
$region0: #{tpu_custom_call.1}
  #allocation0 [shape = 'u32[]', space=smem, size = 0x4, offset = 0x4, fixed_abs, tag = 'smem constant byte address 0x4 - core index']
  #allocation1 [shape = 'u32[72,128]{1,0:T(1,128)}', space=vmem, size = 0x9000, scoped, tag = 'internal scratch']
  %s0 = inlined_call_operand.hbm [shape: f32[8,128], index: 0, kind: input, shape index: {}]
  %s1 = inlined_call_operand.hbm [shape: f32[128,128], index: 1, kind: input, shape index: {}]
  %s2 = inlined_call_operand.vmem [shape: f32[1,128], index: 2, kind: input, shape index: {}]
  %s3 = inlined_call_operand.hbm [shape: f32[128,128], index: 3, kind: input, shape index: {}]
  %s4 = inlined_call_operand.vmem [shape: f32[1,128], index: 4, kind: input, shape index: {}]
  %s5 = inlined_call_operand.hbm [shape: f32[128,128], index: 5, kind: input, shape index: {}]
  %s6 = inlined_call_operand.vmem [shape: f32[1,128], index: 6, kind: input, shape index: {}]
  %s7 = inlined_call_operand.hbm [shape: f32[128,128], index: 7, kind: input, shape index: {}]
  %s8 = inlined_call_operand.vmem [shape: f32[1,128], index: 8, kind: input, shape index: {}]
  %s9 = inlined_call_operand.hbm [shape: f32[8,128], index: 9, kind: output, shape index: {}]
  %s10 = sld [smem:[#allocation0]]
  $region66: #{tpu_custom_call.1} parent=0
    _
  %s12 = ssub.s32 1, %s10
  %s13 = scalar_select 0, %s12, %s10
  $region1: #{tpu_custom_call.1} parent=0
    #allocation2 [shape = 'u8[4096]{0}', space=vmem, size = 0x1000, scoped, tag = 'input window, operand 0, single buffered']
    #allocation3 [shape = 's32[1]{0}', space=sflag, size = 0x4, scoped, tag = 'scoped memory for tpu_custom_call.1']
    #allocation4 [shape = 's32[1]{0}', space=sflag, size = 0x4, scoped, tag = 'scoped memory for tpu_custom_call.1']
    #allocation5 [shape = 'u8[65536]{0}', space=vmem, size = 0x10000, scoped, tag = 'input window, operand 1, single buffered']
    #allocation6 [shape = 's32[1]{0}', space=sflag, size = 0x4, scoped, tag = 'scoped memory for tpu_custom_call.1']
    #allocation7 [shape = 'u8[65536]{0}', space=vmem, size = 0x10000, scoped, tag = 'input window, operand 3, single buffered']
    #allocation8 [shape = 'u8[65536]{0}', space=vmem, size = 0x10000, scoped, tag = 'input window, operand 5, single buffered']
    #allocation9 [shape = 's32[1]{0}', space=sflag, size = 0x4, scoped, tag = 'scoped memory for tpu_custom_call.1']
    #allocation10 [shape = 'u8[65536]{0}', space=vmem, size = 0x10000, scoped, tag = 'input window, operand 7, single buffered']
    #allocation11 [shape = 'u8[4096]{0}', space=vmem, size = 0x1000, scoped, tag = 'output window, operand 0, single buffered']
    %14 = vsyncpa [#allocation3], 0
    %15 = vsyncpa [#allocation6], 0
    %16 = vsyncpa [#allocation9], 0
    %17 = vsyncpa [#allocation4], 0
    // Predicated region
    $region2: #{tpu_custom_call.1} parent=1 // pred_check
      _
    $region3: #{tpu_custom_call.1} parent=1 // pred_check_branch
      %19 = sbr.rel (0) target = $region5
    $region4: #{tpu_custom_call.1} parent=1 // pred_region
      %21 = vsyncadd [#allocation3], 0
      %s23 = sshll.u32 %s0, 4
      %s24 = int_to_ptr.hbm [resolvable:$true] %s23
      %s25 = sshll.u32 [#allocation2], 4
      %s26 = int_to_ptr.vmem [resolvable:$true] %s25
      %28 = dma.hbm_to_vmem [thread:$0]  %s24, 128, %s26, [#allocation3]
    $region5: #{tpu_custom_call.1} parent=1 // pred_fallthru
      _
    // Predicated region
    $region6: #{tpu_custom_call.1} parent=1 // pred_check
      _
    $region7: #{tpu_custom_call.1} parent=1 // pred_check_branch
      %30 = sbr.rel (0) target = $region9
    $region8: #{tpu_custom_call.1} parent=1 // pred_region
      %32 = vsyncadd [#allocation6], 0
      %s33 = sshll.u32 %s1, 4
      %s34 = int_to_ptr.hbm [resolvable:$true] %s33
      %s35 = sshll.u32 [#allocation5], 4
      %s36 = int_to_ptr.vmem [resolvable:$true] %s35
      %41 = dma.hbm_to_vmem [thread:$0]  %s34, 2048, %s36, [#allocation6], 128, 128, 8
    $region9: #{tpu_custom_call.1} parent=1 // pred_fallthru
      _
    // Predicated region
    $region10: #{tpu_custom_call.1} parent=1 // pred_check
      _
    $region11: #{tpu_custom_call.1} parent=1 // pred_check_branch
      %43 = sbr.rel (0) target = $region13
    $region12: #{tpu_custom_call.1} parent=1 // pred_region
      _
    $region13: #{tpu_custom_call.1} parent=1 // pred_fallthru
      _
    // Predicated region
    $region14: #{tpu_custom_call.1} parent=1 // pred_check
      _
    $region15: #{tpu_custom_call.1} parent=1 // pred_check_branch
      %45 = sbr.rel (0) target = $region17
    $region16: #{tpu_custom_call.1} parent=1 // pred_region
      %47 = vsyncadd [#allocation6], 0
      %s48 = sshll.u32 %s3, 4
      %s49 = int_to_ptr.hbm [resolvable:$true] %s48
      %s50 = sshll.u32 [#allocation7], 4
      %s51 = int_to_ptr.vmem [resolvable:$true] %s50
      %56 = dma.hbm_to_vmem [thread:$0]  %s49, 2048, %s51, [#allocation6], 128, 128, 8
    $region17: #{tpu_custom_call.1} parent=1 // pred_fallthru
      _
    // Predicated region
    $region18: #{tpu_custom_call.1} parent=1 // pred_check
      _
    $region19: #{tpu_custom_call.1} parent=1 // pred_check_branch
      %58 = sbr.rel (0) target = $region21
    $region20: #{tpu_custom_call.1} parent=1 // pred_region
      _
    $region21: #{tpu_custom_call.1} parent=1 // pred_fallthru
      _
    // Predicated region
    $region22: #{tpu_custom_call.1} parent=1 // pred_check
      _
    $region23: #{tpu_custom_call.1} parent=1 // pred_check_branch
      %60 = sbr.rel (0) target = $region25
    $region24: #{tpu_custom_call.1} parent=1 // pred_region
      %62 = vsyncadd [#allocation9], 0
      %s63 = sshll.u32 %s5, 4
      %s64 = int_to_ptr.hbm [resolvable:$true] %s63
      %s65 = sshll.u32 [#allocation8], 4
      %s66 = int_to_ptr.vmem [resolvable:$true] %s65
      %71 = dma.hbm_to_vmem [thread:$0]  %s64, 2048, %s66, [#allocation9], 128, 128, 8
    $region25: #{tpu_custom_call.1} parent=1 // pred_fallthru
      _
    // Predicated region
    $region26: #{tpu_custom_call.1} parent=1 // pred_check
      _
    $region27: #{tpu_custom_call.1} parent=1 // pred_check_branch
      %73 = sbr.rel (0) target = $region29
    $region28: #{tpu_custom_call.1} parent=1 // pred_region
      _
    $region29: #{tpu_custom_call.1} parent=1 // pred_fallthru
      _
    // Predicated region
    $region30: #{tpu_custom_call.1} parent=1 // pred_check
      _
    $region31: #{tpu_custom_call.1} parent=1 // pred_check_branch
      %75 = sbr.rel (0) target = $region33
    $region32: #{tpu_custom_call.1} parent=1 // pred_region
      %77 = vsyncadd [#allocation9], 0
      %s78 = sshll.u32 %s7, 4
      %s79 = int_to_ptr.hbm [resolvable:$true] %s78
      %s80 = sshll.u32 [#allocation10], 4
      %s81 = int_to_ptr.vmem [resolvable:$true] %s80
      %86 = dma.hbm_to_vmem [thread:$0]  %s79, 2048, %s81, [#allocation9], 128, 128, 8
    $region33: #{tpu_custom_call.1} parent=1 // pred_fallthru
      _
    // Predicated region
    $region34: #{tpu_custom_call.1} parent=1 // pred_check
      _
    $region35: #{tpu_custom_call.1} parent=1 // pred_check_branch
      %88 = sbr.rel (0) target = $region37
    $region36: #{tpu_custom_call.1} parent=1 // pred_region
      _
    $region37: #{tpu_custom_call.1} parent=1 // pred_fallthru
      _
    // Predicated region
    $region38: #{tpu_custom_call.1} parent=1 // pred_check
      _
    $region39: #{tpu_custom_call.1} parent=1 // pred_check_branch
      %90 = sbr.rel (0) target = $region41
    $region40: #{tpu_custom_call.1} parent=1 // pred_region
      %92 = dma.done [#allocation3], 128
    $region41: #{tpu_custom_call.1} parent=1 // pred_fallthru
      _
    // Predicated region
    $region42: #{tpu_custom_call.1} parent=1 // pred_check
      _
    $region43: #{tpu_custom_call.1} parent=1 // pred_check_branch
      %94 = sbr.rel (0) target = $region45
    $region44: #{tpu_custom_call.1} parent=1 // pred_region
      %96 = dma.done [#allocation6], 2048
    $region45: #{tpu_custom_call.1} parent=1 // pred_fallthru
      _
    // Predicated region
    $region46: #{tpu_custom_call.1} parent=1 // pred_check
      _
    $region47: #{tpu_custom_call.1} parent=1 // pred_check_branch
      %98 = sbr.rel (0) target = $region49
    $region48: #{tpu_custom_call.1} parent=1 // pred_region
      %100 = dma.done [#allocation6], 2048
    $region49: #{tpu_custom_call.1} parent=1 // pred_fallthru
      _
    // Predicated region
    $region50: #{tpu_custom_call.1} parent=1 // pred_check
      _
    $region51: #{tpu_custom_call.1} parent=1 // pred_check_branch
      %102 = sbr.rel (0) target = $region53
    $region52: #{tpu_custom_call.1} parent=1 // pred_region
      %104 = dma.done [#allocation9], 2048
    $region53: #{tpu_custom_call.1} parent=1 // pred_fallthru
      _
    // Predicated region
    $region54: #{tpu_custom_call.1} parent=1 // pred_check
      _
    $region55: #{tpu_custom_call.1} parent=1 // pred_check_branch
      %106 = sbr.rel (0) target = $region57
    $region56: #{tpu_custom_call.1} parent=1 // pred_region
      %108 = dma.done [#allocation9], 2048
    $region57: #{tpu_custom_call.1} parent=1 // pred_fallthru
      _
    %v109 = vld [vmem:[#allocation2] sm:$0xff]
    %v110 = vld [vmem:[#allocation5] sm:$0xff]
    %v111 = vld [vmem:[#allocation5 + $0x8] sm:$0xff]
    %v112 = vld [vmem:[#allocation5 + $0x10] sm:$0xff]
    %v113 = vld [vmem:[#allocation5 + $0x18] sm:$0xff]
    %v114 = vld [vmem:[#allocation5 + $0x20] sm:$0xff]
    %v115 = vld [vmem:[#allocation5 + $0x28] sm:$0xff]
    %v116 = vld [vmem:[#allocation5 + $0x30] sm:$0xff]
    %v117 = vld [vmem:[#allocation5 + $0x38] sm:$0xff]
    %v118 = vld [vmem:[#allocation5 + $0x40] sm:$0xff]
    %v119 = vld [vmem:[#allocation5 + $0x48] sm:$0xff]
    %v120 = vld [vmem:[#allocation5 + $0x50] sm:$0xff]
    %v121 = vld [vmem:[#allocation5 + $0x58] sm:$0xff]
    %v122 = vld [vmem:[#allocation5 + $0x60] sm:$0xff]
    %v123 = vld [vmem:[#allocation5 + $0x68] sm:$0xff]
    %v124 = vld [vmem:[#allocation5 + $0x70] sm:$0xff]
    %v125 = vld [vmem:[#allocation5 + $0x78] sm:$0xff]
    %v126 = vld [vmem:[%s2] sm:$0x1]
    %v128 = vperm.slane %v126, 0
    %130 = vmatpush.msra.mxu0 %v125
    %131 = vmatpush.msra.mxu0 %v124
    %132 = vmatpush.msra.mxu0 %v123
    %133 = vmatpush.msra.mxu0 %v122
    %134 = vmatpush.msra.mxu0 %v121
    %135 = vmatpush.msra.mxu0 %v120
    %136 = vmatpush.msra.mxu0 %v119
    %137 = vmatpush.msra.mxu0 %v118
    %138 = vmatpush.msra.mxu0 %v117
    %139 = vmatpush.msra.mxu0 %v116
    %140 = vmatpush.msra.mxu0 %v115
    %141 = vmatpush.msra.mxu0 %v114
    %142 = vmatpush.msra.mxu0 %v113
    %143 = vmatpush.msra.mxu0 %v112
    %144 = vmatpush.msra.mxu0 %v111
    %145 = vmatpush.msra.mxu0 %v110
    %146 = vmatmul.f32.gmra.mxu0 %v109
    %v147 = vpop.f32.mrf.mxu0
    %v148 = vadd.f32 %v128, %v147
    %149 = vdwg.mxu0
    %v150 = vld [vmem:[#allocation7] sm:$0xff]
    %v151 = vld [vmem:[#allocation7 + $0x8] sm:$0xff]
    %v152 = vld [vmem:[#allocation7 + $0x10] sm:$0xff]
    %v153 = vld [vmem:[#allocation7 + $0x18] sm:$0xff]
    %v154 = vld [vmem:[#allocation7 + $0x20] sm:$0xff]
    %v155 = vld [vmem:[#allocation7 + $0x28] sm:$0xff]
    %v156 = vld [vmem:[#allocation7 + $0x30] sm:$0xff]
    %v157 = vld [vmem:[#allocation7 + $0x38] sm:$0xff]
    %v158 = vld [vmem:[#allocation7 + $0x40] sm:$0xff]
    %v159 = vld [vmem:[#allocation7 + $0x48] sm:$0xff]
    %v160 = vld [vmem:[#allocation7 + $0x50] sm:$0xff]
    %v161 = vld [vmem:[#allocation7 + $0x58] sm:$0xff]
    %v162 = vld [vmem:[#allocation7 + $0x60] sm:$0xff]
    %v163 = vld [vmem:[#allocation7 + $0x68] sm:$0xff]
    %v164 = vld [vmem:[#allocation7 + $0x70] sm:$0xff]
    %v165 = vld [vmem:[#allocation7 + $0x78] sm:$0xff]
    %v166 = vld [vmem:[%s4] sm:$0x1]
    %v167 = vmax.f32 %v148, 0.0
    %v169 = vperm.slane %v166, 0
    %171 = vmatpush.msra.mxu0 %v165
    %172 = vmatpush.msra.mxu0 %v164
    %173 = vmatpush.msra.mxu0 %v163
    %174 = vmatpush.msra.mxu0 %v162
    %175 = vmatpush.msra.mxu0 %v161
    %176 = vmatpush.msra.mxu0 %v160
    %177 = vmatpush.msra.mxu0 %v159
    %178 = vmatpush.msra.mxu0 %v158
    %179 = vmatpush.msra.mxu0 %v157
    %180 = vmatpush.msra.mxu0 %v156
    %181 = vmatpush.msra.mxu0 %v155
    %182 = vmatpush.msra.mxu0 %v154
    %183 = vmatpush.msra.mxu0 %v153
    %184 = vmatpush.msra.mxu0 %v152
    %185 = vmatpush.msra.mxu0 %v151
    %186 = vmatpush.msra.mxu0 %v150
    %187 = vmatmul.f32.gmra.mxu0 %v167
    %v188 = vpop.f32.mrf.mxu0
    %v189 = vadd.f32 %v169, %v188
    %190 = vdwg.mxu0
    %v191 = vld [vmem:[#allocation8] sm:$0xff]
    %v192 = vld [vmem:[#allocation8 + $0x8] sm:$0xff]
    %v193 = vld [vmem:[#allocation8 + $0x10] sm:$0xff]
    %v194 = vld [vmem:[#allocation8 + $0x18] sm:$0xff]
    %v195 = vld [vmem:[#allocation8 + $0x20] sm:$0xff]
    %v196 = vld [vmem:[#allocation8 + $0x28] sm:$0xff]
    %v197 = vld [vmem:[#allocation8 + $0x30] sm:$0xff]
    %v198 = vld [vmem:[#allocation8 + $0x38] sm:$0xff]
    %v199 = vld [vmem:[#allocation8 + $0x40] sm:$0xff]
    %v200 = vld [vmem:[#allocation8 + $0x48] sm:$0xff]
    %v201 = vld [vmem:[#allocation8 + $0x50] sm:$0xff]
    %v202 = vld [vmem:[#allocation8 + $0x58] sm:$0xff]
    %v203 = vld [vmem:[#allocation8 + $0x60] sm:$0xff]
    %v204 = vld [vmem:[#allocation8 + $0x68] sm:$0xff]
    %v205 = vld [vmem:[#allocation8 + $0x70] sm:$0xff]
    %v206 = vld [vmem:[#allocation8 + $0x78] sm:$0xff]
    %v207 = vld [vmem:[%s6] sm:$0x1]
    %v208 = vmax.f32 %v189, 0.0
    %v210 = vperm.slane %v207, 0
    %212 = vmatpush.msra.mxu0 %v206
    %213 = vmatpush.msra.mxu0 %v205
    %214 = vmatpush.msra.mxu0 %v204
    %215 = vmatpush.msra.mxu0 %v203
    %216 = vmatpush.msra.mxu0 %v202
    %217 = vmatpush.msra.mxu0 %v201
    %218 = vmatpush.msra.mxu0 %v200
    %219 = vmatpush.msra.mxu0 %v199
    %220 = vmatpush.msra.mxu0 %v198
    %221 = vmatpush.msra.mxu0 %v197
    %222 = vmatpush.msra.mxu0 %v196
    %223 = vmatpush.msra.mxu0 %v195
    %224 = vmatpush.msra.mxu0 %v194
    %225 = vmatpush.msra.mxu0 %v193
    %226 = vmatpush.msra.mxu0 %v192
    %227 = vmatpush.msra.mxu0 %v191
    %228 = vmatmul.f32.gmra.mxu0 %v208
    %v229 = vpop.f32.mrf.mxu0
    %v230 = vadd.f32 %v210, %v229
    %231 = vdwg.mxu0
    %v232 = vld [vmem:[#allocation10] sm:$0xff]
    %v233 = vld [vmem:[#allocation10 + $0x8] sm:$0xff]
    %v234 = vld [vmem:[#allocation10 + $0x10] sm:$0xff]
    %v235 = vld [vmem:[#allocation10 + $0x18] sm:$0xff]
    %v236 = vld [vmem:[#allocation10 + $0x20] sm:$0xff]
    %v237 = vld [vmem:[#allocation10 + $0x28] sm:$0xff]
    %v238 = vld [vmem:[#allocation10 + $0x30] sm:$0xff]
    %v239 = vld [vmem:[#allocation10 + $0x38] sm:$0xff]
    %v240 = vld [vmem:[#allocation10 + $0x40] sm:$0xff]
    %v241 = vld [vmem:[#allocation10 + $0x48] sm:$0xff]
    %v242 = vld [vmem:[#allocation10 + $0x50] sm:$0xff]
    %v243 = vld [vmem:[#allocation10 + $0x58] sm:$0xff]
    %v244 = vld [vmem:[#allocation10 + $0x60] sm:$0xff]
    %v245 = vld [vmem:[#allocation10 + $0x68] sm:$0xff]
    %v246 = vld [vmem:[#allocation10 + $0x70] sm:$0xff]
    %v247 = vld [vmem:[#allocation10 + $0x78] sm:$0xff]
    %v248 = vld [vmem:[%s8] sm:$0x1]
    %v249 = vmax.f32 %v230, 0.0
    %v251 = vperm.slane %v248, 0
    %253 = vmatpush.msra.mxu0 %v247
    %254 = vmatpush.msra.mxu0 %v246
    %255 = vmatpush.msra.mxu0 %v245
    %256 = vmatpush.msra.mxu0 %v244
    %257 = vmatpush.msra.mxu0 %v243
    %258 = vmatpush.msra.mxu0 %v242
    %259 = vmatpush.msra.mxu0 %v241
    %260 = vmatpush.msra.mxu0 %v240
    %261 = vmatpush.msra.mxu0 %v239
    %262 = vmatpush.msra.mxu0 %v238
    %263 = vmatpush.msra.mxu0 %v237
    %264 = vmatpush.msra.mxu0 %v236
    %265 = vmatpush.msra.mxu0 %v235
    %266 = vmatpush.msra.mxu0 %v234
    %267 = vmatpush.msra.mxu0 %v233
    %268 = vmatpush.msra.mxu0 %v232
    %269 = vmatmul.f32.gmra.mxu0 %v249
    %v270 = vpop.f32.mrf.mxu0
    %v271 = vadd.f32 %v251, %v270
    %272 = vdwg.mxu0
    %v273 = vmax.f32 %v271, 0.0
    %274 = vst [vmem:[#allocation11] sm:$0xff] %v273
    // Predicated region
    $region58: #{tpu_custom_call.1} parent=1 // pred_check
      _
    $region59: #{tpu_custom_call.1} parent=1 // pred_check_branch
      %276 = sbr.rel (0) target = $region61
    $region60: #{tpu_custom_call.1} parent=1 // pred_region
      %278 = vsyncadd [#allocation4], 0
      %s280 = sshll.u32 [#allocation11], 4
      %s281 = int_to_ptr.vmem [resolvable:$true] %s280
      %s282 = sshll.u32 %s9, 4
      %s283 = int_to_ptr.hbm [resolvable:$true] %s282
      %285 = dma.vmem_to_hbm [thread:$0]  %s281, 128, %s283, [#allocation4]
    $region61: #{tpu_custom_call.1} parent=1 // pred_fallthru
      _
    // Predicated region
    $region62: #{tpu_custom_call.1} parent=1 // pred_check
      _
    $region63: #{tpu_custom_call.1} parent=1 // pred_check_branch
      %287 = sbr.rel (0) target = $region65
    $region64: #{tpu_custom_call.1} parent=1 // pred_region
      %289 = dma.done [#allocation4], 128
    $region65: #{tpu_custom_call.1} parent=1 // pred_fallthru
      _
    %290 = vsyncpa [#allocation3], 1
    %291 = vsyncpa [#allocation6], 1
    %292 = vsyncpa [#allocation9], 1
    %293 = vsyncpa [#allocation4], 1

// kernel: tpu_custom_call.1
$region0: #{tpu_custom_call.1}
  #allocation0 [shape = 'u32[]', space=smem, size = 0x4, offset = 0x4, fixed_abs, tag = 'smem constant byte address 0x4 - core index']
  #allocation1 [shape = 'u32[72,128]{1,0:T(1,128)}', space=vmem, size = 0x9000, scoped, tag = 'internal scratch']
  %s0 = inlined_call_operand.hbm [shape: f32[8,128], index: 0, kind: input, shape index: {}]
  %s1 = inlined_call_operand.hbm [shape: f32[128,128], index: 1, kind: input, shape index: {}]
  %s2 = inlined_call_operand.vmem [shape: f32[1,128], index: 2, kind: input, shape index: {}]
  %s3 = inlined_call_operand.hbm [shape: f32[128,128], index: 3, kind: input, shape index: {}]
  %s4 = inlined_call_operand.vmem [shape: f32[1,128], index: 4, kind: input, shape index: {}]
  %s5 = inlined_call_operand.hbm [shape: f32[128,128], index: 5, kind: input, shape index: {}]
  %s6 = inlined_call_operand.vmem [shape: f32[1,128], index: 6, kind: input, shape index: {}]
  %s7 = inlined_call_operand.hbm [shape: f32[128,128], index: 7, kind: input, shape index: {}]
  %s8 = inlined_call_operand.vmem [shape: f32[1,128], index: 8, kind: input, shape index: {}]
  %s9 = inlined_call_operand.hbm [shape: f32[8,128], index: 9, kind: output, shape index: {}]
  %s10 = sld [smem:[#allocation0]]
  $region66: #{tpu_custom_call.1} parent=0
    _
  %s12 = ssub.s32 1, %s10
  %s13 = scalar_select 0, %s12, %s10
  $region1: #{tpu_custom_call.1} parent=0
    #allocation2 [shape = 'u8[4096]{0}', space=vmem, size = 0x1000, scoped, tag = 'input window, operand 0, single buffered']
    #allocation3 [shape = 's32[1]{0}', space=sflag, size = 0x4, scoped, tag = 'scoped memory for tpu_custom_call.1']
    #allocation4 [shape = 's32[1]{0}', space=sflag, size = 0x4, scoped, tag = 'scoped memory for tpu_custom_call.1']
    #allocation5 [shape = 'u8[65536]{0}', space=vmem, size = 0x10000, scoped, tag = 'input window, operand 1, single buffered']
    #allocation6 [shape = 's32[1]{0}', space=sflag, size = 0x4, scoped, tag = 'scoped memory for tpu_custom_call.1']
    #allocation7 [shape = 'u8[65536]{0}', space=vmem, size = 0x10000, scoped, tag = 'input window, operand 3, single buffered']
    #allocation8 [shape = 'u8[65536]{0}', space=vmem, size = 0x10000, scoped, tag = 'input window, operand 5, single buffered']
    #allocation9 [shape = 's32[1]{0}', space=sflag, size = 0x4, scoped, tag = 'scoped memory for tpu_custom_call.1']
    #allocation10 [shape = 'u8[65536]{0}', space=vmem, size = 0x10000, scoped, tag = 'input window, operand 7, single buffered']
    #allocation11 [shape = 'u8[4096]{0}', space=vmem, size = 0x1000, scoped, tag = 'output window, operand 0, single buffered']
    %14 = vsyncpa [#allocation3], 0
    %15 = vsyncpa [#allocation6], 0
    %16 = vsyncpa [#allocation9], 0
    %17 = vsyncpa [#allocation4], 0
    // Predicated region
    $region2: #{tpu_custom_call.1} parent=1 // pred_check
      _
    $region3: #{tpu_custom_call.1} parent=1 // pred_check_branch
      %19 = sbr.rel (0) target = $region5
    $region4: #{tpu_custom_call.1} parent=1 // pred_region
      %21 = vsyncadd [#allocation3], 0
      %s23 = sshll.u32 %s0, 4
      %s24 = int_to_ptr.hbm [resolvable:$true] %s23
      %s25 = sshll.u32 [#allocation2], 4
      %s26 = int_to_ptr.vmem [resolvable:$true] %s25
      %28 = dma.hbm_to_vmem [thread:$0]  %s24, 128, %s26, [#allocation3]
    $region5: #{tpu_custom_call.1} parent=1 // pred_fallthru
      _
    // Predicated region
    $region6: #{tpu_custom_call.1} parent=1 // pred_check
      _
    $region7: #{tpu_custom_call.1} parent=1 // pred_check_branch
      %30 = sbr.rel (0) target = $region9
    $region8: #{tpu_custom_call.1} parent=1 // pred_region
      %32 = vsyncadd [#allocation6], 0
      %s33 = sshll.u32 %s1, 4
      %s34 = int_to_ptr.hbm [resolvable:$true] %s33
      %s35 = sshll.u32 [#allocation5], 4
      %s36 = int_to_ptr.vmem [resolvable:$true] %s35
      %41 = dma.hbm_to_vmem [thread:$0]  %s34, 2048, %s36, [#allocation6], 128, 128, 8
    $region9: #{tpu_custom_call.1} parent=1 // pred_fallthru
      _
    // Predicated region
    $region10: #{tpu_custom_call.1} parent=1 // pred_check
      _
    $region11: #{tpu_custom_call.1} parent=1 // pred_check_branch
      %43 = sbr.rel (0) target = $region13
    $region12: #{tpu_custom_call.1} parent=1 // pred_region
      _
    $region13: #{tpu_custom_call.1} parent=1 // pred_fallthru
      _
    // Predicated region
    $region14: #{tpu_custom_call.1} parent=1 // pred_check
      _
    $region15: #{tpu_custom_call.1} parent=1 // pred_check_branch
      %45 = sbr.rel (0) target = $region17
    $region16: #{tpu_custom_call.1} parent=1 // pred_region
      %47 = vsyncadd [#allocation6], 0
      %s48 = sshll.u32 %s3, 4
      %s49 = int_to_ptr.hbm [resolvable:$true] %s48
      %s50 = sshll.u32 [#allocation7], 4
      %s51 = int_to_ptr.vmem [resolvable:$true] %s50
      %56 = dma.hbm_to_vmem [thread:$0]  %s49, 2048, %s51, [#allocation6], 128, 128, 8
    $region17: #{tpu_custom_call.1} parent=1 // pred_fallthru
      _
    // Predicated region
    $region18: #{tpu_custom_call.1} parent=1 // pred_check
      _
    $region19: #{tpu_custom_call.1} parent=1 // pred_check_branch
      %58 = sbr.rel (0) target = $region21
    $region20: #{tpu_custom_call.1} parent=1 // pred_region
      _
    $region21: #{tpu_custom_call.1} parent=1 // pred_fallthru
      _
    // Predicated region
    $region22: #{tpu_custom_call.1} parent=1 // pred_check
      _
    $region23: #{tpu_custom_call.1} parent=1 // pred_check_branch
      %60 = sbr.rel (0) target = $region25
    $region24: #{tpu_custom_call.1} parent=1 // pred_region
      %62 = vsyncadd [#allocation9], 0
      %s63 = sshll.u32 %s5, 4
      %s64 = int_to_ptr.hbm [resolvable:$true] %s63
      %s65 = sshll.u32 [#allocation8], 4
      %s66 = int_to_ptr.vmem [resolvable:$true] %s65
      %71 = dma.hbm_to_vmem [thread:$0]  %s64, 2048, %s66, [#allocation9], 128, 128, 8
    $region25: #{tpu_custom_call.1} parent=1 // pred_fallthru
      _
    // Predicated region
    $region26: #{tpu_custom_call.1} parent=1 // pred_check
      _
    $region27: #{tpu_custom_call.1} parent=1 // pred_check_branch
      %73 = sbr.rel (0) target = $region29
    $region28: #{tpu_custom_call.1} parent=1 // pred_region
      _
    $region29: #{tpu_custom_call.1} parent=1 // pred_fallthru
      _
    // Predicated region
    $region30: #{tpu_custom_call.1} parent=1 // pred_check
      _
    $region31: #{tpu_custom_call.1} parent=1 // pred_check_branch
      %75 = sbr.rel (0) target = $region33
    $region32: #{tpu_custom_call.1} parent=1 // pred_region
      %77 = vsyncadd [#allocation9], 0
      %s78 = sshll.u32 %s7, 4
      %s79 = int_to_ptr.hbm [resolvable:$true] %s78
      %s80 = sshll.u32 [#allocation10], 4
      %s81 = int_to_ptr.vmem [resolvable:$true] %s80
      %86 = dma.hbm_to_vmem [thread:$0]  %s79, 2048, %s81, [#allocation9], 128, 128, 8
    $region33: #{tpu_custom_call.1} parent=1 // pred_fallthru
      _
    // Predicated region
    $region34: #{tpu_custom_call.1} parent=1 // pred_check
      _
    $region35: #{tpu_custom_call.1} parent=1 // pred_check_branch
      %88 = sbr.rel (0) target = $region37
    $region36: #{tpu_custom_call.1} parent=1 // pred_region
      _
    $region37: #{tpu_custom_call.1} parent=1 // pred_fallthru
      _
    // Predicated region
    $region38: #{tpu_custom_call.1} parent=1 // pred_check
      _
    $region39: #{tpu_custom_call.1} parent=1 // pred_check_branch
      %90 = sbr.rel (0) target = $region41
    $region40: #{tpu_custom_call.1} parent=1 // pred_region
      %92 = dma.done [#allocation3], 128
    $region41: #{tpu_custom_call.1} parent=1 // pred_fallthru
      _
    // Predicated region
    $region42: #{tpu_custom_call.1} parent=1 // pred_check
      _
    $region43: #{tpu_custom_call.1} parent=1 // pred_check_branch
      %94 = sbr.rel (0) target = $region45
    $region44: #{tpu_custom_call.1} parent=1 // pred_region
      %96 = dma.done [#allocation6], 2048
    $region45: #{tpu_custom_call.1} parent=1 // pred_fallthru
      _
    // Predicated region
    $region46: #{tpu_custom_call.1} parent=1 // pred_check
      _
    $region47: #{tpu_custom_call.1} parent=1 // pred_check_branch
      %98 = sbr.rel (0) target = $region49
    $region48: #{tpu_custom_call.1} parent=1 // pred_region
      %100 = dma.done [#allocation6], 2048
    $region49: #{tpu_custom_call.1} parent=1 // pred_fallthru
      _
    // Predicated region
    $region50: #{tpu_custom_call.1} parent=1 // pred_check
      _
    $region51: #{tpu_custom_call.1} parent=1 // pred_check_branch
      %102 = sbr.rel (0) target = $region53
    $region52: #{tpu_custom_call.1} parent=1 // pred_region
      %104 = dma.done [#allocation9], 2048
    $region53: #{tpu_custom_call.1} parent=1 // pred_fallthru
      _
    // Predicated region
    $region54: #{tpu_custom_call.1} parent=1 // pred_check
      _
    $region55: #{tpu_custom_call.1} parent=1 // pred_check_branch
      %106 = sbr.rel (0) target = $region57
    $region56: #{tpu_custom_call.1} parent=1 // pred_region
      %108 = dma.done [#allocation9], 2048
    $region57: #{tpu_custom_call.1} parent=1 // pred_fallthru
      _
    %v109 = vld [vmem:[#allocation2] sm:$0xff]
    %v110 = vld [vmem:[#allocation5] sm:$0xff]
    %v111 = vld [vmem:[#allocation5 + $0x8] sm:$0xff]
    %v112 = vld [vmem:[#allocation5 + $0x10] sm:$0xff]
    %v113 = vld [vmem:[#allocation5 + $0x18] sm:$0xff]
    %v114 = vld [vmem:[#allocation5 + $0x20] sm:$0xff]
    %v115 = vld [vmem:[#allocation5 + $0x28] sm:$0xff]
    %v116 = vld [vmem:[#allocation5 + $0x30] sm:$0xff]
    %v117 = vld [vmem:[#allocation5 + $0x38] sm:$0xff]
    %v118 = vld [vmem:[#allocation5 + $0x40] sm:$0xff]
    %v119 = vld [vmem:[#allocation5 + $0x48] sm:$0xff]
    %v120 = vld [vmem:[#allocation5 + $0x50] sm:$0xff]
    %v121 = vld [vmem:[#allocation5 + $0x58] sm:$0xff]
    %v122 = vld [vmem:[#allocation5 + $0x60] sm:$0xff]
    %v123 = vld [vmem:[#allocation5 + $0x68] sm:$0xff]
    %v124 = vld [vmem:[#allocation5 + $0x70] sm:$0xff]
    %v125 = vld [vmem:[#allocation5 + $0x78] sm:$0xff]
    %v126 = vld [vmem:[%s2] sm:$0x1]
    %v128 = vperm.slane %v126, 0
    %130 = vmatpush.msra.mxu0 %v125
    %131 = vmatpush.msra.mxu0 %v124
    %132 = vmatpush.msra.mxu0 %v123
    %133 = vmatpush.msra.mxu0 %v122
    %134 = vmatpush.msra.mxu0 %v121
    %135 = vmatpush.msra.mxu0 %v120
    %136 = vmatpush.msra.mxu0 %v119
    %137 = vmatpush.msra.mxu0 %v118
    %138 = vmatpush.msra.mxu0 %v117
    %139 = vmatpush.msra.mxu0 %v116
    %140 = vmatpush.msra.mxu0 %v115
    %141 = vmatpush.msra.mxu0 %v114
    %142 = vmatpush.msra.mxu0 %v113
    %143 = vmatpush.msra.mxu0 %v112
    %144 = vmatpush.msra.mxu0 %v111
    %145 = vmatpush.msra.mxu0 %v110
    %146 = vmatmul.f32.gmra.mxu0 %v109
    %v147 = vpop.f32.mrf.mxu0
    %v148 = vadd.f32 %v128, %v147
    %149 = vdwg.mxu0
    %v150 = vld [vmem:[#allocation7] sm:$0xff]
    %v151 = vld [vmem:[#allocation7 + $0x8] sm:$0xff]
    %v152 = vld [vmem:[#allocation7 + $0x10] sm:$0xff]
    %v153 = vld [vmem:[#allocation7 + $0x18] sm:$0xff]
    %v154 = vld [vmem:[#allocation7 + $0x20] sm:$0xff]
    %v155 = vld [vmem:[#allocation7 + $0x28] sm:$0xff]
    %v156 = vld [vmem:[#allocation7 + $0x30] sm:$0xff]
    %v157 = vld [vmem:[#allocation7 + $0x38] sm:$0xff]
    %v158 = vld [vmem:[#allocation7 + $0x40] sm:$0xff]
    %v159 = vld [vmem:[#allocation7 + $0x48] sm:$0xff]
    %v160 = vld [vmem:[#allocation7 + $0x50] sm:$0xff]
    %v161 = vld [vmem:[#allocation7 + $0x58] sm:$0xff]
    %v162 = vld [vmem:[#allocation7 + $0x60] sm:$0xff]
    %v163 = vld [vmem:[#allocation7 + $0x68] sm:$0xff]
    %v164 = vld [vmem:[#allocation7 + $0x70] sm:$0xff]
    %v165 = vld [vmem:[#allocation7 + $0x78] sm:$0xff]
    %v166 = vld [vmem:[%s4] sm:$0x1]
    %v167 = vmax.f32 %v148, 0.0
    %v169 = vperm.slane %v166, 0
    %171 = vmatpush.msra.mxu0 %v165
    %172 = vmatpush.msra.mxu0 %v164
    %173 = vmatpush.msra.mxu0 %v163
    %174 = vmatpush.msra.mxu0 %v162
    %175 = vmatpush.msra.mxu0 %v161
    %176 = vmatpush.msra.mxu0 %v160
    %177 = vmatpush.msra.mxu0 %v159
    %178 = vmatpush.msra.mxu0 %v158
    %179 = vmatpush.msra.mxu0 %v157
    %180 = vmatpush.msra.mxu0 %v156
    %181 = vmatpush.msra.mxu0 %v155
    %182 = vmatpush.msra.mxu0 %v154
    %183 = vmatpush.msra.mxu0 %v153
    %184 = vmatpush.msra.mxu0 %v152
    %185 = vmatpush.msra.mxu0 %v151
    %186 = vmatpush.msra.mxu0 %v150
    %187 = vmatmul.f32.gmra.mxu0 %v167
    %v188 = vpop.f32.mrf.mxu0
    %v189 = vadd.f32 %v169, %v188
    %190 = vdwg.mxu0
    %v191 = vld [vmem:[#allocation8] sm:$0xff]
    %v192 = vld [vmem:[#allocation8 + $0x8] sm:$0xff]
    %v193 = vld [vmem:[#allocation8 + $0x10] sm:$0xff]
    %v194 = vld [vmem:[#allocation8 + $0x18] sm:$0xff]
    %v195 = vld [vmem:[#allocation8 + $0x20] sm:$0xff]
    %v196 = vld [vmem:[#allocation8 + $0x28] sm:$0xff]
    %v197 = vld [vmem:[#allocation8 + $0x30] sm:$0xff]
    %v198 = vld [vmem:[#allocation8 + $0x38] sm:$0xff]
    %v199 = vld [vmem:[#allocation8 + $0x40] sm:$0xff]
    %v200 = vld [vmem:[#allocation8 + $0x48] sm:$0xff]
    %v201 = vld [vmem:[#allocation8 + $0x50] sm:$0xff]
    %v202 = vld [vmem:[#allocation8 + $0x58] sm:$0xff]
    %v203 = vld [vmem:[#allocation8 + $0x60] sm:$0xff]
    %v204 = vld [vmem:[#allocation8 + $0x68] sm:$0xff]
    %v205 = vld [vmem:[#allocation8 + $0x70] sm:$0xff]
    %v206 = vld [vmem:[#allocation8 + $0x78] sm:$0xff]
    %v207 = vld [vmem:[%s6] sm:$0x1]
    %v208 = vmax.f32 %v189, 0.0
    %v210 = vperm.slane %v207, 0
    %212 = vmatpush.msra.mxu0 %v206
    %213 = vmatpush.msra.mxu0 %v205
    %214 = vmatpush.msra.mxu0 %v204
    %215 = vmatpush.msra.mxu0 %v203
    %216 = vmatpush.msra.mxu0 %v202
    %217 = vmatpush.msra.mxu0 %v201
    %218 = vmatpush.msra.mxu0 %v200
    %219 = vmatpush.msra.mxu0 %v199
    %220 = vmatpush.msra.mxu0 %v198
    %221 = vmatpush.msra.mxu0 %v197
    %222 = vmatpush.msra.mxu0 %v196
    %223 = vmatpush.msra.mxu0 %v195
    %224 = vmatpush.msra.mxu0 %v194
    %225 = vmatpush.msra.mxu0 %v193
    %226 = vmatpush.msra.mxu0 %v192
    %227 = vmatpush.msra.mxu0 %v191
    %228 = vmatmul.f32.gmra.mxu0 %v208
    %v229 = vpop.f32.mrf.mxu0
    %v230 = vadd.f32 %v210, %v229
    %231 = vdwg.mxu0
    %v232 = vld [vmem:[#allocation10] sm:$0xff]
    %v233 = vld [vmem:[#allocation10 + $0x8] sm:$0xff]
    %v234 = vld [vmem:[#allocation10 + $0x10] sm:$0xff]
    %v235 = vld [vmem:[#allocation10 + $0x18] sm:$0xff]
    %v236 = vld [vmem:[#allocation10 + $0x20] sm:$0xff]
    %v237 = vld [vmem:[#allocation10 + $0x28] sm:$0xff]
    %v238 = vld [vmem:[#allocation10 + $0x30] sm:$0xff]
    %v239 = vld [vmem:[#allocation10 + $0x38] sm:$0xff]
    %v240 = vld [vmem:[#allocation10 + $0x40] sm:$0xff]
    %v241 = vld [vmem:[#allocation10 + $0x48] sm:$0xff]
    %v242 = vld [vmem:[#allocation10 + $0x50] sm:$0xff]
    %v243 = vld [vmem:[#allocation10 + $0x58] sm:$0xff]
    %v244 = vld [vmem:[#allocation10 + $0x60] sm:$0xff]
    %v245 = vld [vmem:[#allocation10 + $0x68] sm:$0xff]
    %v246 = vld [vmem:[#allocation10 + $0x70] sm:$0xff]
    %v247 = vld [vmem:[#allocation10 + $0x78] sm:$0xff]
    %v248 = vld [vmem:[%s8] sm:$0x1]
    %v249 = vmax.f32 %v230, 0.0
    %v251 = vperm.slane %v248, 0
    %253 = vmatpush.msra.mxu0 %v247
    %254 = vmatpush.msra.mxu0 %v246
    %255 = vmatpush.msra.mxu0 %v245
    %256 = vmatpush.msra.mxu0 %v244
    %257 = vmatpush.msra.mxu0 %v243
    %258 = vmatpush.msra.mxu0 %v242
    %259 = vmatpush.msra.mxu0 %v241
    %260 = vmatpush.msra.mxu0 %v240
    %261 = vmatpush.msra.mxu0 %v239
    %262 = vmatpush.msra.mxu0 %v238
    %263 = vmatpush.msra.mxu0 %v237
    %264 = vmatpush.msra.mxu0 %v236
    %265 = vmatpush.msra.mxu0 %v235
    %266 = vmatpush.msra.mxu0 %v234
    %267 = vmatpush.msra.mxu0 %v233
    %268 = vmatpush.msra.mxu0 %v232
    %269 = vmatmul.f32.gmra.mxu0 %v249
    %v270 = vpop.f32.mrf.mxu0
    %v271 = vadd.f32 %v251, %v270
    %272 = vdwg.mxu0
    %v273 = vmax.f32 %v271, 0.0
    %274 = vst [vmem:[#allocation11] sm:$0xff] %v273
    // Predicated region
    $region58: #{tpu_custom_call.1} parent=1 // pred_check
      _
    $region59: #{tpu_custom_call.1} parent=1 // pred_check_branch
      %276 = sbr.rel (0) target = $region61
    $region60: #{tpu_custom_call.1} parent=1 // pred_region
      %278 = vsyncadd [#allocation4], 0
      %s280 = sshll.u32 [#allocation11], 4
      %s281 = int_to_ptr.vmem [resolvable:$true] %s280
      %s282 = sshll.u32 %s9, 4
      %s283 = int_to_ptr.hbm [resolvable:$true] %s282
      %285 = dma.vmem_to_hbm [thread:$0]  %s281, 128, %s283, [#allocation4]
    $region61: #{tpu_custom_call.1} parent=1 // pred_fallthru
      _
    // Predicated region
    $region62: #{tpu_custom_call.1} parent=1 // pred_check
      _
    $region63: #{tpu_custom_call.1} parent=1 // pred_check_branch
      %287 = sbr.rel (0) target = $region65
    $region64: #{tpu_custom_call.1} parent=1 // pred_region
      %289 = dma.done [#allocation4], 128
    $region65: #{tpu_custom_call.1} parent=1 // pred_fallthru
      _
    %290 = vsyncpa [#allocation3], 1
    %291 = vsyncpa [#allocation6], 1
    %292 = vsyncpa [#allocation9], 1
    %293 = vsyncpa [#allocation4], 1

</llo_original>
